<compile_context>
chip_gen: v7x
topology: tpu7x:2x2x1
jax: 0.10.0
libtpu: 0.0.40
codegen_flags: <defaults>
</compile_context>

<pallas_src>
import jax
import jax.numpy as jnp
from jax.experimental import pallas as pl
from jax.experimental.pallas import tpu as pltpu


def _round_up(x, m):
    return ((x + m - 1) // m) * m


# --------------------------------------------------------------------------
# Pallas kernel: one row tile (rows = batch * num_nodes) per grid step.
# --------------------------------------------------------------------------
def _encoder_kernel(inp_ref, w1_ref, b1_ref, wcat_ref, bcat_ref, out_ref):
    """Fused MLP hot path.

    inp_ref  : [TM, n_xdims]         row tile of flattened inputs
    w1_ref   : [n_xdims, n_hid]      resident in VMEM across the grid
    b1_ref   : [1, n_hid]
    wcat_ref : [n_hid, 2*n_out]      [W2 | W2 - W2 @ A1^T]   (folded logits)
    bcat_ref : [1, 2*n_out]          [b2 | b2 - (b2+Wa) @ A1^T]
    out_ref  : [TM, 2*n_out]         merged [x | logits] slab
    """
    h1 = jnp.dot(inp_ref[...], w1_ref[...],
                 preferred_element_type=jnp.float32) + b1_ref[...]
    h1 = jnp.maximum(h1, 0.0)                                   # ReLU
    out_ref[...] = jnp.dot(h1, wcat_ref[...],
                           preferred_element_type=jnp.float32) + bcat_ref[...]


# --------------------------------------------------------------------------
# Wrapper
# --------------------------------------------------------------------------
def daggnn_mlp_encoder_forward(inputs, params, *, max_rows_per_tile=2048):
    """inputs: [B, d, n_xdims] float32. Returns the 8-tuple of the PyTorch module."""
    B, d, n_xdims = inputs.shape
    W1, b1 = params["W1"], params["b1"]          # [n_xdims, n_hid], [n_hid]
    W2, b2 = params["W2"], params["b2"]          # [n_hid, n_out],  [n_out]
    Wa = params["Wa"]                            # [n_out]
    adj_A = params["adj_A"]                      # [d, d]
    n_hid = W1.shape[1]
    n_out = W2.shape[1]
    assert n_out == d, "torch.matmul(x + Wa, adj_Aforz) requires n_out == d"

    # ---- adjacency path: tiny, done ONCE per call in plain XLA -------------
    #   adj_A1 = sinh(3*adj_A);  fold (I - A1^T) into the second linear layer:
    #   logits = h1 @ (W2 - W2 @ A1^T) + (b2 - (b2 + Wa) @ A1^T)
    adj_A1 = jnp.sinh(3.0 * adj_A.astype(jnp.float32))
    a1t = adj_A1.T
    W2f = W2.astype(jnp.float32)
    b2f = b2.astype(jnp.float32)
    Waf = Wa.astype(jnp.float32)
    W2_eff = W2f - W2f @ a1t                               # [n_hid, n_out]
    b_eff = b2f - (b2f + Waf) @ a1t                        # [n_out]
    W_cat = jnp.concatenate([W2f, W2_eff], axis=1)         # [n_hid, 2*n_out]
    b_cat = jnp.concatenate([b2f, b_eff]).reshape(1, 2 * n_out)
    b1_2d = b1.astype(jnp.float32).reshape(1, n_hid)

    # ---- row tiling ---------------------------------------------------------
    # TM a multiple of 8 (f32 sublane); pad M up and slice outputs back so a
    # ragged trailing tile never aliases valid rows.  Force an even tile count
    # whenever M spans more than one tile so v7x's two TensorCores both get
    # work under dimension_semantics=("parallel",).
    M = B * d
    num_tiles = pl.cdiv(M, max_rows_per_tile)
    if M > max_rows_per_tile and num_tiles % 2 == 1:
        num_tiles += 1
    TM = _round_up(pl.cdiv(M, num_tiles), 8)
    M_pad = TM * num_tiles

    inp_flat = inputs.reshape(M, n_xdims).astype(jnp.float32)
    # TODO(synk): for very large M, storing the activation stream in bf16
    # (f32 accumulation stays via preferred_element_type) would halve HBM
    # traffic; kept f32 to stay faithful to the float/double-mixing module.
    # TODO(synk): a fully lane-dense layout (features on sublanes, rows on
    # lanes) would lift lane occupancy from 16/128 to full width, but needs a
    # wrapper-side transpose of the whole activation stream — only worth it
    # when adjacent ops can produce/consume that layout.
    if M_pad != M:
        inp_flat = jnp.pad(inp_flat, ((0, M_pad - M), (0, 0)))

    # ---- VMEM budget (per-generation safe: capped under v7x's 64 MiB) ------
    def _lane_pad(n):
        return _round_up(n, 128)

    blk_bytes = 4 * TM * (_lane_pad(n_xdims) + _lane_pad(2 * n_out))   # in + out block
    weight_bytes = 4 * (_round_up(n_xdims, 8) * _lane_pad(n_hid)
                        + _round_up(n_hid, 8) * _lane_pad(2 * n_out)
                        + 8 * (_lane_pad(n_hid) + _lane_pad(2 * n_out)))
    vmem_limit = 2 * blk_bytes + 2 * weight_bytes + (4 << 20)          # dbl-buffer + headroom
    vmem_limit = int(min(max(vmem_limit, 16 << 20), 48 << 20))

    flops = 2 * M_pad * n_hid * (n_xdims + 2 * n_out)
    bytes_accessed = 4 * (M_pad * (n_xdims + 2 * n_out)
                          + n_xdims * n_hid + n_hid * 2 * n_out
                          + n_hid + 2 * n_out)
    cost = pl.CostEstimate(flops=flops, transcendentals=0,
                           bytes_accessed=bytes_accessed)

    out_flat = pl.pallas_call(
        _encoder_kernel,
        out_shape=jax.ShapeDtypeStruct((M_pad, 2 * n_out), jnp.float32),
        grid=(num_tiles,),
        in_specs=[
            pl.BlockSpec((TM, n_xdims), lambda i: (i, 0)),       # row-tiled activations
            pl.BlockSpec((n_xdims, n_hid), lambda i: (0, 0)),    # weights resident in VMEM
            pl.BlockSpec((1, n_hid), lambda i: (0, 0)),
            pl.BlockSpec((n_hid, 2 * n_out), lambda i: (0, 0)),  # [W2 | W2_eff]
            pl.BlockSpec((1, 2 * n_out), lambda i: (0, 0)),      # [b2 | b_eff]
        ],
        out_specs=pl.BlockSpec((TM, 2 * n_out), lambda i: (i, 0)),
        compiler_params=pltpu.CompilerParams(
            dimension_semantics=("parallel",),   # independent row tiles -> megacore split
            vmem_limit_bytes=vmem_limit,
        ),
        cost_estimate=cost,
    )(inp_flat, W1.astype(jnp.float32), b1_2d, W_cat, b_cat)

    x = out_flat[:M, :n_out].reshape(B, d, n_out)
    logits = out_flat[:M, n_out:].reshape(B, d, d)
    adj_A_eye = jnp.eye(d, dtype=jnp.float32)

    return (x, logits, adj_A1, adj_A_eye, params["z"], params["z_positive"],
            adj_A, Wa)


# --------------------------------------------------------------------------
# Deterministic parameter construction (mirrors __init__ / init_weights)
# --------------------------------------------------------------------------
def make_params(key, d, n_xdims, n_hid, n_out, tol=0.1):
    k_adj, k_w1, k_b1, k_w2, k_b2 = jax.random.split(key, 5)
    # adj_A: small deterministic values (the numpy arg of the PyTorch module)
    adj_A = 0.1 * jax.random.normal(k_adj, (d, d), jnp.float32)
    # xavier_normal_ for Linear weights; stored pre-transposed ([in, out])
    std1 = (2.0 / (n_xdims + n_hid)) ** 0.5
    std2 = (2.0 / (n_hid + n_out)) ** 0.5
    W1 = std1 * jax.random.normal(k_w1, (n_xdims, n_hid), jnp.float32)
    W2 = std2 * jax.random.normal(k_w2, (n_hid, n_out), jnp.float32)
    # nn.Linear default bias init: U(-1/sqrt(fan_in), 1/sqrt(fan_in))
    b1 = jax.random.uniform(k_b1, (n_hid,), jnp.float32,
                            -1.0 / n_xdims ** 0.5, 1.0 / n_xdims ** 0.5)
    b2 = jax.random.uniform(k_b2, (n_out,), jnp.float32,
                            -1.0 / n_hid ** 0.5, 1.0 / n_hid ** 0.5)
    Wa = jnp.zeros((n_out,), jnp.float32)
    z = jnp.asarray(tol, jnp.float32)
    z_positive = jnp.ones((d, d), jnp.float32)
    return dict(adj_A=adj_A, W1=W1, b1=b1, W2=W2, b2=b2, Wa=Wa,
                z=z, z_positive=z_positive)


if __name__ == "__main__":
    # small shapes consistent with the module: batch=2, d(num nodes)=8,
    # n_xdims=8, n_hid=32, n_out=8 (n_out must equal d for the logits matmul)
    B, d, n_xdims, n_hid, n_out = 2, 8, 8, 32, 8

    key = jax.random.PRNGKey(0)
    k_params, k_inp = jax.random.split(key)
    params = make_params(k_params, d, n_xdims, n_hid, n_out)
    inputs = jax.random.normal(k_inp, (B, d, n_xdims), jnp.float32)

    fwd = jax.jit(daggnn_mlp_encoder_forward)
    outs = jax.block_until_ready(fwd(inputs, params))

    # sanity check against a pure-JAX reference using the LITERAL module
    # formula (the kernel uses the exact algebraic rewrite
    # (x+Wa)(I - A1^T) - Wa == h1 @ (W2 - W2@A1^T) + (b2 - (b2+Wa)@A1^T),
    # so a slightly looser rtol on logits covers FP reassociation).
    adj_A1_ref = jnp.sinh(3.0 * params["adj_A"])
    adj_Aforz = jnp.eye(d, dtype=jnp.float32) - adj_A1_ref.T
    H1_ref = jax.nn.relu(inputs @ params["W1"] + params["b1"])
    x_ref = H1_ref @ params["W2"] + params["b2"]
    logits_ref = (x_ref + params["Wa"]) @ adj_Aforz - params["Wa"]

    assert jnp.allclose(outs[0], x_ref, atol=1e-4, rtol=1e-4)
    assert jnp.allclose(outs[1], logits_ref, atol=2e-4, rtol=1e-3)
    assert jnp.allclose(outs[2], adj_A1_ref, atol=1e-5, rtol=1e-5)

    print("KERNEL_OK")
</pallas_src>

<mosaic_0001>
module attributes {stable_mosaic.version = 11 : i64} {
  func.func @_encoder_kernel(%arg0: i32, %arg1: memref<16x8xf32, #tpu.memory_space<vmem>>, %arg2: memref<8x32xf32, #tpu.memory_space<vmem>>, %arg3: memref<1x32xf32, #tpu.memory_space<vmem>>, %arg4: memref<32x16xf32, #tpu.memory_space<vmem>>, %arg5: memref<1x16xf32, #tpu.memory_space<vmem>>, %arg6: memref<16x16xf32, #tpu.memory_space<vmem>>) attributes {dimension_semantics = [#tpu.dimension_semantics<parallel>], iteration_bounds = array<i64: 1>, scalar_prefetch = 0 : i64, scratch_operands = 0 : i64, tpu.core_type = #tpu.core_type<tc>, window_params = [{transform_indices = @transform_0, window_bounds = array<i64: 16, 8>}, {pipeline_mode = #tpu.pipeline_mode<synchronous>, transform_indices = @transform_1, window_bounds = array<i64: 8, 32>}, {pipeline_mode = #tpu.pipeline_mode<synchronous>, transform_indices = @transform_2, window_bounds = array<i64: 1, 32>}, {pipeline_mode = #tpu.pipeline_mode<synchronous>, transform_indices = @transform_3, window_bounds = array<i64: 32, 16>}, {pipeline_mode = #tpu.pipeline_mode<synchronous>, transform_indices = @transform_4, window_bounds = array<i64: 1, 16>}, {transform_indices = @transform_5, window_bounds = array<i64: 16, 16>}]} {
    %c0 = arith.constant 0 : index
    %c0_0 = arith.constant 0 : index
    %0 = vector.load %arg1[%c0, %c0_0] : memref<16x8xf32, #tpu.memory_space<vmem>>, vector<16x8xf32>
    %c0_1 = arith.constant 0 : index
    %c0_2 = arith.constant 0 : index
    %1 = vector.load %arg2[%c0_1, %c0_2] : memref<8x32xf32, #tpu.memory_space<vmem>>, vector<8x32xf32>
    %cst = arith.constant dense<0.000000e+00> : vector<16x32xf32>
    %2 = tpu.matmul %0, %1, %cst {dimension_numbers = #tpu.dot_dimension_numbers<[1], [0], [0], [1], [0, 0, 1, 1], [], []>} : vector<16x8xf32>, vector<8x32xf32>, vector<16x32xf32> -> vector<16x32xf32>
    %c0_3 = arith.constant 0 : index
    %c0_4 = arith.constant 0 : index
    %3 = vector.load %arg3[%c0_3, %c0_4] : memref<1x32xf32, #tpu.memory_space<vmem>>, vector<1x32xf32>
    %4 = vector.broadcast %3 : vector<1x32xf32> to vector<16x32xf32>
    %5 = arith.addf %2, %4 : vector<16x32xf32>
    %cst_5 = arith.constant 0.000000e+00 : f32
    %6 = vector.broadcast %cst_5 : f32 to vector<16x32xf32>
    %7 = arith.maximumf %5, %6 : vector<16x32xf32>
    %c0_6 = arith.constant 0 : index
    %c0_7 = arith.constant 0 : index
    %8 = vector.load %arg4[%c0_6, %c0_7] : memref<32x16xf32, #tpu.memory_space<vmem>>, vector<32x16xf32>
    %cst_8 = arith.constant dense<0.000000e+00> : vector<16x16xf32>
    %9 = tpu.matmul %7, %8, %cst_8 {dimension_numbers = #tpu.dot_dimension_numbers<[1], [0], [0], [1], [0, 0, 1, 1], [], []>} : vector<16x32xf32>, vector<32x16xf32>, vector<16x16xf32> -> vector<16x16xf32>
    %c0_9 = arith.constant 0 : index
    %c0_10 = arith.constant 0 : index
    %10 = vector.load %arg5[%c0_9, %c0_10] : memref<1x16xf32, #tpu.memory_space<vmem>>, vector<1x16xf32>
    %11 = vector.broadcast %10 : vector<1x16xf32> to vector<16x16xf32>
    %12 = arith.addf %9, %11 : vector<16x16xf32>
    %c0_11 = arith.constant 0 : index
    %c0_12 = arith.constant 0 : index
    %13 = vector.load %arg6[%c0_11, %c0_12] : memref<16x16xf32, #tpu.memory_space<vmem>>, vector<16x16xf32>
    tpu.vector_store %arg6[%c0_11, %c0_12], %12 {strides = array<i32>} : memref<16x16xf32, #tpu.memory_space<vmem>>, vector<16x16xf32>,
    return
  }
  func.func @transform_0(%arg0: i32) -> (i32, i32) {
    %c0_i32 = arith.constant 0 : i32
    %c0_i32_0 = arith.constant 0 : i32
    return %arg0, %c0_i32 : i32, i32
  }
  func.func @transform_1(%arg0: i32) -> (i32, i32) {
    %c0_i32 = arith.constant 0 : i32
    %c0_i32_0 = arith.constant 0 : i32
    %c0_i32_1 = arith.constant 0 : i32
    return %c0_i32, %c0_i32_0 : i32, i32
  }
  func.func @transform_2(%arg0: i32) -> (i32, i32) {
    %c0_i32 = arith.constant 0 : i32
    %c0_i32_0 = arith.constant 0 : i32
    %c0_i32_1 = arith.constant 0 : i32
    return %c0_i32, %c0_i32_0 : i32, i32
  }
  func.func @transform_3(%arg0: i32) -> (i32, i32) {
    %c0_i32 = arith.constant 0 : i32
    %c0_i32_0 = arith.constant 0 : i32
    %c0_i32_1 = arith.constant 0 : i32
    return %c0_i32, %c0_i32_0 : i32, i32
  }
  func.func @transform_4(%arg0: i32) -> (i32, i32) {
    %c0_i32 = arith.constant 0 : i32
    %c0_i32_0 = arith.constant 0 : i32
    %c0_i32_1 = arith.constant 0 : i32
    return %c0_i32, %c0_i32_0 : i32, i32
  }
  func.func @transform_5(%arg0: i32) -> (i32, i32) {
    %c0_i32 = arith.constant 0 : i32
    %c0_i32_0 = arith.constant 0 : i32
    return %arg0, %c0_i32 : i32, i32
  }
}

</mosaic_0001>

<llo_original>
// kernel: sub.3
$region0: #{sub.3}
  #allocation0 [shape = 's32[1]{0}', space=sflag, size = 0x4, scoped, tag = 'scoped memory for sub.3']
  %s0 = inlined_call_operand.vmem [shape: f32[8], index: 0, kind: input, shape index: {}]
  %s1 = inlined_call_operand.vmem [shape: f32[8], index: 1, kind: input, shape index: {}]
  %s2 = inlined_call_operand.vmem [shape: f32[8], index: 2, kind: output, shape index: {}]
  %v3 = vld [vmem:[%s0] sm:$0x1]
  %v4 = vld [vmem:[%s1] sm:$0x1]
  %5 = xla_tuple %v3, %v4
  %6 = xla_tuple %5
  %v7 = vsub.f32 %v3, %v4
  %8 = xla_tuple %v7
  %9 = vst [vmem:[%s2] sm:$0x1] %v7

// kernel: daggnn_mlp_encoder_forward.1
$region0: #{daggnn_mlp_encoder_forward.1}
  #allocation0 [shape = 'u32[]', space=smem, size = 0x4, offset = 0x4, fixed_abs, tag = 'smem constant byte address 0x4 - core index']
  #allocation1 [shape = 'u32[144,128]{1,0:T(1,128)}', space=vmem, size = 0x12000, scoped, tag = 'internal scratch']
  %s0 = inlined_call_operand.vmem [shape: f32[16,8], index: 0, kind: input, shape index: {}]
  %s1 = inlined_call_operand.vmem [shape: f32[8,32], index: 1, kind: input, shape index: {}]
  %s2 = inlined_call_operand.vmem [shape: f32[1,32], index: 2, kind: input, shape index: {}]
  %s3 = inlined_call_operand.vmem [shape: f32[32,16], index: 3, kind: input, shape index: {}]
  %s4 = inlined_call_operand.vmem [shape: f32[1,16], index: 4, kind: input, shape index: {}]
  %s5 = inlined_call_operand.vmem [shape: f32[16,16], index: 5, kind: output, shape index: {}]
  %s6 = sld [smem:[#allocation0]]
  $region30: #{daggnn_mlp_encoder_forward.1} parent=0
    _
  %s8 = ssub.s32 1, %s6
  %s9 = scalar_select 0, %s8, %s6
  // Predicated region
  $region2: #{daggnn_mlp_encoder_forward.1} parent=0 // pred_check
    _
  $region3: #{daggnn_mlp_encoder_forward.1} parent=0 // pred_check_branch
    %11 = sbr.rel (0) target = $region5
  $region4: #{daggnn_mlp_encoder_forward.1} parent=0 // pred_region
    _
  $region5: #{daggnn_mlp_encoder_forward.1} parent=0 // pred_fallthru
    _
  // Predicated region
  $region6: #{daggnn_mlp_encoder_forward.1} parent=0 // pred_check
    _
  $region7: #{daggnn_mlp_encoder_forward.1} parent=0 // pred_check_branch
    %13 = sbr.rel (0) target = $region9
  $region8: #{daggnn_mlp_encoder_forward.1} parent=0 // pred_region
    _
  $region9: #{daggnn_mlp_encoder_forward.1} parent=0 // pred_fallthru
    _
  // Predicated region
  $region10: #{daggnn_mlp_encoder_forward.1} parent=0 // pred_check
    _
  $region11: #{daggnn_mlp_encoder_forward.1} parent=0 // pred_check_branch
    %15 = sbr.rel (0) target = $region13
  $region12: #{daggnn_mlp_encoder_forward.1} parent=0 // pred_region
    _
  $region13: #{daggnn_mlp_encoder_forward.1} parent=0 // pred_fallthru
    _
  // Predicated region
  $region14: #{daggnn_mlp_encoder_forward.1} parent=0 // pred_check
    _
  $region15: #{daggnn_mlp_encoder_forward.1} parent=0 // pred_check_branch
    %17 = sbr.rel (0) target = $region17
  $region16: #{daggnn_mlp_encoder_forward.1} parent=0 // pred_region
    _
  $region17: #{daggnn_mlp_encoder_forward.1} parent=0 // pred_fallthru
    _
  // Predicated region
  $region18: #{daggnn_mlp_encoder_forward.1} parent=0 // pred_check
    _
  $region19: #{daggnn_mlp_encoder_forward.1} parent=0 // pred_check_branch
    %19 = sbr.rel (0) target = $region21
  $region20: #{daggnn_mlp_encoder_forward.1} parent=0 // pred_region
    _
  $region21: #{daggnn_mlp_encoder_forward.1} parent=0 // pred_fallthru
    _
  %v20 = vld [vmem:[%s0] sm:$0xff]
  %v21 = vld [vmem:[%s0 + $0x8] sm:$0xff]
  %v22 = vld [vmem:[%s1] sm:$0xff]
  %v23 = vld [vmem:[%s2] sm:$0x1]
  %v25 = vlaneseq
  %v26 = vshrl.u32 %v25, 7
  %v27 = vsub.s32 0, %v26
  %v28 = vrot.slane %v23, %v27
  %vm30 = vcmask 64512
  %v32 = vsel %vm30, %v20, 0
  %v35 = vsel %vm30, %v21, 0
  %37 = vmatprep.subr.mxu0 0.0
  %38 = vmatpush1.msra.mxu0 %v22
  %39 = vmatprep.subr.mxu0 0.0
  %40 = vmatpush1.msra.mxu0 0.0
  %41 = vmatprep.subr.mxu0 0.0
  %42 = vmatpush1.msra.mxu0 0.0
  %43 = vmatprep.subr.mxu0 0.0
  %44 = vmatpush1.msra.mxu0 0.0
  %45 = vmatprep.subr.mxu0 0.0
  %46 = vmatpush1.msra.mxu0 0.0
  %47 = vmatprep.subr.mxu0 0.0
  %48 = vmatpush1.msra.mxu0 0.0
  %49 = vmatprep.subr.mxu0 0.0
  %50 = vmatpush1.msra.mxu0 0.0
  %51 = vmatprep.subr.mxu0 0.0
  %52 = vmatpush1.msra.mxu0 0.0
  %53 = vmatprep.subr.mxu0 0.0
  %54 = vmatpush1.msra.mxu0 0.0
  %55 = vmatprep.subr.mxu0 0.0
  %56 = vmatpush1.msra.mxu0 0.0
  %57 = vmatprep.subr.mxu0 0.0
  %58 = vmatpush1.msra.mxu0 0.0
  %59 = vmatprep.subr.mxu0 0.0
  %60 = vmatpush1.msra.mxu0 0.0
  %61 = vmatprep.subr.mxu0 0.0
  %62 = vmatpush1.msra.mxu0 0.0
  %63 = vmatprep.subr.mxu0 0.0
  %64 = vmatpush1.msra.mxu0 0.0
  %65 = vmatprep.subr.mxu0 0.0
  %66 = vmatpush1.msra.mxu0 0.0
  %67 = vmatprep.subr.mxu0 0.0
  %68 = vmatpush1.msra.mxu0 0.0
  %69 = vmatprep.subr.mxu0 0.0
  %70 = vmatpush1.msra.mxu0 0.0
  %71 = vmatprep.subr.mxu0 0.0
  %72 = vmatpush1.msra.mxu0 0.0
  %73 = vmatprep.subr.mxu0 0.0
  %74 = vmatpush1.msra.mxu0 0.0
  %75 = vmatprep.subr.mxu0 0.0
  %76 = vmatpush1.msra.mxu0 0.0
  %77 = vmatprep.subr.mxu0 0.0
  %78 = vmatpush1.msra.mxu0 0.0
  %79 = vmatprep.subr.mxu0 0.0
  %80 = vmatpush1.msra.mxu0 0.0
  %81 = vmatprep.subr.mxu0 0.0
  %82 = vmatpush1.msra.mxu0 0.0
  %83 = vmatprep.subr.mxu0 0.0
  %84 = vmatpush1.msra.mxu0 0.0
  %85 = vmatprep.subr.mxu0 0.0
  %86 = vmatpush1.msra.mxu0 0.0
  %87 = vmatprep.subr.mxu0 0.0
  %88 = vmatpush1.msra.mxu0 0.0
  %89 = vmatprep.subr.mxu0 0.0
  %90 = vmatpush1.msra.mxu0 0.0
  %91 = vmatprep.subr.mxu0 0.0
  %92 = vmatpush1.msra.mxu0 0.0
  %93 = vmatprep.subr.mxu0 0.0
  %94 = vmatpush1.msra.mxu0 0.0
  %95 = vmatprep.subr.mxu0 0.0
  %96 = vmatpush1.msra.mxu0 0.0
  %97 = vmatprep.subr.mxu0 0.0
  %98 = vmatpush1.msra.mxu0 0.0
  %99 = vmatprep.subr.mxu0 0.0
  %100 = vmatpush1.msra.mxu0 0.0
  %101 = vmatprep.mubr.f32.mxu0 0.0
  %102 = vmatmul.mubr.f32.gmra.mrb[0].mxu0 %v32
  %v103 = vpop.f32.mrb[0].mxu0
  %v104 = vadd.f32 %v28, %v103
  %v105 = vpop.f32.mrb[0].mxu0
  %106 = vmatprep.mubr.f32.mxu0 0.0
  %107 = vmatmul.mubr.f32.gmra.mrb[0].mxu0 %v35
  %v108 = vpop.f32.mrb[0].mxu0
  %v109 = vadd.f32 %v28, %v108
  %v110 = vpop.f32.mrb[0].mxu0
  %111 = vdwg.mxu0
  %v112 = vmax.f32 %v104, 0.0
  %v113 = vmax.f32 %v109, 0.0
  %v114 = vld [vmem:[%s3] sm:$0xff]
  %v115 = vld [vmem:[%s3 + $0x8] sm:$0xff]
  %v116 = vld [vmem:[%s3 + $0x10] sm:$0xff]
  %v117 = vld [vmem:[%s3 + $0x18] sm:$0xff]
  %v118 = vld [vmem:[%s4] sm:$0x1]
  %v120 = vlaneseq
  %v121 = vshrl.u32 %v120, 7
  %v122 = vsub.s32 0, %v121
  %v123 = vrot.slane %v118, %v122
  %vm125 = vcmask 261120
  %v127 = vsel %vm125, %v112, 0
  %v130 = vsel %vm125, %v113, 0
  %132 = vmatprep.subr.mxu0 0.0
  %133 = vmatpush1.msra.mxu0 %v114
  %134 = vmatprep.subr.mxu0 0.0
  %135 = vmatpush1.msra.mxu0 %v115
  %136 = vmatprep.subr.mxu0 0.0
  %137 = vmatpush1.msra.mxu0 %v116
  %138 = vmatprep.subr.mxu0 0.0
  %139 = vmatpush1.msra.mxu0 %v117
  %140 = vmatprep.subr.mxu0 0.0
  %141 = vmatpush1.msra.mxu0 0.0
  %142 = vmatprep.subr.mxu0 0.0
  %143 = vmatpush1.msra.mxu0 0.0
  %144 = vmatprep.subr.mxu0 0.0
  %145 = vmatpush1.msra.mxu0 0.0
  %146 = vmatprep.subr.mxu0 0.0
  %147 = vmatpush1.msra.mxu0 0.0
  %148 = vmatprep.subr.mxu0 0.0
  %149 = vmatpush1.msra.mxu0 0.0
  %150 = vmatprep.subr.mxu0 0.0
  %151 = vmatpush1.msra.mxu0 0.0
  %152 = vmatprep.subr.mxu0 0.0
  %153 = vmatpush1.msra.mxu0 0.0
  %154 = vmatprep.subr.mxu0 0.0
  %155 = vmatpush1.msra.mxu0 0.0
  %156 = vmatprep.subr.mxu0 0.0
  %157 = vmatpush1.msra.mxu0 0.0
  %158 = vmatprep.subr.mxu0 0.0
  %159 = vmatpush1.msra.mxu0 0.0
  %160 = vmatprep.subr.mxu0 0.0
  %161 = vmatpush1.msra.mxu0 0.0
  %162 = vmatprep.subr.mxu0 0.0
  %163 = vmatpush1.msra.mxu0 0.0
  %164 = vmatprep.subr.mxu0 0.0
  %165 = vmatpush1.msra.mxu0 0.0
  %166 = vmatprep.subr.mxu0 0.0
  %167 = vmatpush1.msra.mxu0 0.0
  %168 = vmatprep.subr.mxu0 0.0
  %169 = vmatpush1.msra.mxu0 0.0
  %170 = vmatprep.subr.mxu0 0.0
  %171 = vmatpush1.msra.mxu0 0.0
  %172 = vmatprep.subr.mxu0 0.0
  %173 = vmatpush1.msra.mxu0 0.0
  %174 = vmatprep.subr.mxu0 0.0
  %175 = vmatpush1.msra.mxu0 0.0
  %176 = vmatprep.subr.mxu0 0.0
  %177 = vmatpush1.msra.mxu0 0.0
  %178 = vmatprep.subr.mxu0 0.0
  %179 = vmatpush1.msra.mxu0 0.0
  %180 = vmatprep.subr.mxu0 0.0
  %181 = vmatpush1.msra.mxu0 0.0
  %182 = vmatprep.subr.mxu0 0.0
  %183 = vmatpush1.msra.mxu0 0.0
  %184 = vmatprep.subr.mxu0 0.0
  %185 = vmatpush1.msra.mxu0 0.0
  %186 = vmatprep.subr.mxu0 0.0
  %187 = vmatpush1.msra.mxu0 0.0
  %188 = vmatprep.subr.mxu0 0.0
  %189 = vmatpush1.msra.mxu0 0.0
  %190 = vmatprep.subr.mxu0 0.0
  %191 = vmatpush1.msra.mxu0 0.0
  %192 = vmatprep.subr.mxu0 0.0
  %193 = vmatpush1.msra.mxu0 0.0
  %194 = vmatprep.subr.mxu0 0.0
  %195 = vmatpush1.msra.mxu0 0.0
  %196 = vmatprep.mubr.f32.mxu0 0.0
  %197 = vmatmul.mubr.f32.gmra.mrb[0].mxu0 %v127
  %v198 = vpop.f32.mrb[0].mxu0
  %v199 = vadd.f32 %v123, %v198
  %v200 = vpop.f32.mrb[0].mxu0
  %201 = vmatprep.mubr.f32.mxu0 0.0
  %202 = vmatmul.mubr.f32.gmra.mrb[0].mxu0 %v130
  %v203 = vpop.f32.mrb[0].mxu0
  %v204 = vadd.f32 %v123, %v203
  %v205 = vpop.f32.mrb[0].mxu0
  %206 = vdwg.mxu0
  %vm207 = vcmask 130048
  %208 = vst.msk [vmem:[%s5] sm:$0xff] %vm207, %v199
  %209 = vst.msk [vmem:[%s5 + $0x8] sm:$0xff] %vm207, %v204
  // Predicated region
  $region22: #{daggnn_mlp_encoder_forward.1} parent=0 // pred_check
    _
  $region23: #{daggnn_mlp_encoder_forward.1} parent=0 // pred_check_branch
    %211 = sbr.rel (0) target = $region25
  $region24: #{daggnn_mlp_encoder_forward.1} parent=0 // pred_region
    _
  $region25: #{daggnn_mlp_encoder_forward.1} parent=0 // pred_fallthru
    _
  // Predicated region
  $region26: #{daggnn_mlp_encoder_forward.1} parent=0 // pred_check
    _
  $region27: #{daggnn_mlp_encoder_forward.1} parent=0 // pred_check_branch
    %213 = sbr.rel (0) target = $region29
  $region28: #{daggnn_mlp_encoder_forward.1} parent=0 // pred_region
    _
  $region29: #{daggnn_mlp_encoder_forward.1} parent=0 // pred_fallthru
    _

</llo_original>
